<compile_context>
chip_gen: v7x
topology: tpu7x:2x2x1
jax: 0.10.0
libtpu: 0.0.40
codegen_flags: <defaults>
</compile_context>

<pallas_src>
import jax
import jax.numpy as jnp
from jax import lax
from jax.experimental import pallas as pl
from jax.experimental.pallas import tpu as pltpu

H1 = 32
IN_DIM = 300
OUT_DIM = 4


def _round_up(n, m):
    return ((n + m - 1) // m) * m


def nlp_kernel(x_ref, w1_ref, b1_ref, w2_ref, b2_ref, o_ref):
    # In-kernel bf16 cast of the activation tile (no extra HBM pass).
    x = x_ref[...].astype(jnp.bfloat16)                       # (TB, 300) bf16

    # fc1: contract the shared last dim, f32 accumulation on the MXU.
    h = lax.dot_general(
        x, w1_ref[...],
        dimension_numbers=(((1,), (1,)), ((), ())),
        preferred_element_type=jnp.float32,
    )                                                          # (TB, 32) f32
    h = jnp.maximum(h + b1_ref[...], 0.0)                      # bias + ReLU (dropout eval = identity)

    # fc2 with swapped operands -> lane-dense (4, TB) logits so the whole
    # softmax epilogue and the output store use fully populated lanes.
    logits = lax.dot_general(
        w2_ref[...], h,
        dimension_numbers=(((1,), (1,)), ((), ())),
        preferred_element_type=jnp.float32,
    )                                                          # (4, TB) f32
    logits = logits + b2_ref[...]                              # b2 broadcast as (4, 1)

    # Softmax over the class axis (axis 0 in this orientation), f32 throughout.
    m = jnp.max(logits, axis=0, keepdims=True)                 # (1, TB)
    e = jnp.exp(logits - m)
    denom = jnp.sum(e, axis=0, keepdims=True)                  # (1, TB)
    o_ref[...] = e / denom                                     # exact normalization


def _pick_tile(B, tb):
    """Pick the batch tile.

    Small batches: a single block covering the whole array (block shape ==
    array shape satisfies the (8,128) rule, no padding needed).
    Large batches: a multiple-of-128 tile (so the lane-dense (4, TB) output
    block is 128-aligned), capped so the grid has at least 2 steps (the
    "parallel" axis can then shard across v7x's two TensorCores).  The last
    block may be ragged: grid = cdiv, out-of-bounds output lanes are dropped.
    """
    if B <= 256:
        return B
    tb128 = max(128, (tb // 128) * 128)
    half = _round_up(-(-B // 2), 128)
    return min(tb128, half)


def nlp_forward(x, w1, b1, w2, b2, *, tb=4096):
    """x: (B, 300) f32; w1: (32, 300); b1: (32,); w2: (4, 32); b2: (4,)."""
    B = x.shape[0]
    TB = _pick_tile(B, tb)
    grid = (pl.cdiv(B, TB),)

    # Weights are tiny; keep them resident in VMEM.  w1 is cast to bf16 once
    # (~19 KB); x stays f32 in HBM and is cast per-tile inside the kernel.
    w1_bf16 = w1.astype(jnp.bfloat16)
    b1r = b1.reshape(1, H1).astype(jnp.float32)
    w2f = w2.astype(jnp.float32)
    b2r = b2.reshape(OUT_DIM, 1).astype(jnp.float32)

    cost = pl.CostEstimate(
        flops=2 * B * IN_DIM * H1 + 2 * B * H1 * OUT_DIM,
        transcendentals=B * OUT_DIM,
        bytes_accessed=(B * IN_DIM * 4                       # f32 activations (dominant stream)
                        + H1 * IN_DIM * 2                    # bf16 w1
                        + (OUT_DIM * H1 + H1 + OUT_DIM) * 4  # w2 + biases
                        + OUT_DIM * B * 4),                  # lane-dense f32 output
    )

    out_t = pl.pallas_call(
        nlp_kernel,
        out_shape=jax.ShapeDtypeStruct((OUT_DIM, B), jnp.float32),
        grid=grid,
        in_specs=[
            pl.BlockSpec((TB, IN_DIM), lambda i: (i, 0)),      # activations: tiled over batch
            pl.BlockSpec((H1, IN_DIM), lambda i: (0, 0)),      # w1 (bf16): resident
            pl.BlockSpec((1, H1), lambda i: (0, 0)),           # b1: resident
            pl.BlockSpec((OUT_DIM, H1), lambda i: (0, 0)),     # w2: resident
            pl.BlockSpec((OUT_DIM, 1), lambda i: (0, 0)),      # b2 (column): resident
        ],
        out_specs=pl.BlockSpec((OUT_DIM, TB), lambda i: (0, i)),
        compiler_params=pltpu.CompilerParams(
            dimension_semantics=("parallel",),
            vmem_limit_bytes=32 * 1024 * 1024,
        ),
        cost_estimate=cost,
    )(x.astype(jnp.float32), w1_bf16, b1r, w2f, b2r)

    # Small (4, B) -> (B, 4) transpose back to the module's output layout.
    return out_t.T


def ref_forward(x, w1, b1, w2, b2):
    h = jnp.maximum(x @ w1.T + b1, 0.0)
    logits = h @ w2.T + b2
    return jax.nn.softmax(logits, axis=1)


def _check(x, w1, b1, w2, b2, **kw):
    out = jax.block_until_ready(nlp_forward(x, w1, b1, w2, b2, **kw))
    ref = ref_forward(x, w1, b1, w2, b2)
    assert out.shape == ref.shape
    # bf16 fc1 inputs -> loosened tolerance vs the f32 reference.
    assert jnp.allclose(out, ref, atol=2e-2, rtol=2e-2), "mismatch vs reference"
    assert jnp.allclose(jnp.sum(out, axis=1), 1.0, atol=1e-4), "softmax rows must sum to 1"
    return out


if __name__ == "__main__":
    key = jax.random.PRNGKey(0)
    kx, k1, k2, k3, k4, kx2, kx3 = jax.random.split(key, 7)

    # Deterministic init mimicking PyTorch Linear's U(-1/sqrt(fan_in), 1/sqrt(fan_in))
    bound1 = 1.0 / (IN_DIM ** 0.5)
    w1 = jax.random.uniform(k1, (H1, IN_DIM), jnp.float32, -bound1, bound1)
    b1 = jax.random.uniform(k2, (H1,), jnp.float32, -bound1, bound1)
    bound2 = 1.0 / (H1 ** 0.5)
    w2 = jax.random.uniform(k3, (OUT_DIM, H1), jnp.float32, -bound2, bound2)
    b2 = jax.random.uniform(k4, (OUT_DIM,), jnp.float32, -bound2, bound2)

    # Small primary test: single full block, no padding.
    x = jax.random.normal(kx, (8, IN_DIM), dtype=jnp.float32)
    _check(x, w1, b1, w2, b2)

    # Multi-step grid with a ragged last block (B not a multiple of 8 or 128).
    x2 = jax.random.normal(kx2, (300, IN_DIM), dtype=jnp.float32)
    _check(x2, w1, b1, w2, b2)

    # Larger batch exercising the ">= 2 grid steps" tiling policy.
    x3 = jax.random.normal(kx3, (1000, IN_DIM), dtype=jnp.float32)
    _check(x3, w1, b1, w2, b2)

    print("KERNEL_OK")
</pallas_src>

<mosaic_0001>
module attributes {stable_mosaic.version = 11 : i64} {
  func.func @nlp_kernel(%arg0: i32, %arg1: memref<8x300xf32, #tpu.memory_space<vmem>>, %arg2: memref<32x300xbf16, #tpu.memory_space<vmem>>, %arg3: memref<1x32xf32, #tpu.memory_space<vmem>>, %arg4: memref<4x32xf32, #tpu.memory_space<vmem>>, %arg5: memref<4x1xf32, #tpu.memory_space<vmem>>, %arg6: memref<4x8xf32, #tpu.memory_space<vmem>>) attributes {dimension_semantics = [#tpu.dimension_semantics<parallel>], iteration_bounds = array<i64: 1>, scalar_prefetch = 0 : i64, scratch_operands = 0 : i64, tpu.core_type = #tpu.core_type<tc>, window_params = [{transform_indices = @transform_0, window_bounds = array<i64: 8, 300>}, {pipeline_mode = #tpu.pipeline_mode<synchronous>, transform_indices = @transform_1, window_bounds = array<i64: 32, 300>}, {pipeline_mode = #tpu.pipeline_mode<synchronous>, transform_indices = @transform_2, window_bounds = array<i64: 1, 32>}, {pipeline_mode = #tpu.pipeline_mode<synchronous>, transform_indices = @transform_3, window_bounds = array<i64: 4, 32>}, {pipeline_mode = #tpu.pipeline_mode<synchronous>, transform_indices = @transform_4, window_bounds = array<i64: 4, 1>}, {transform_indices = @transform_5, window_bounds = array<i64: 4, 8>}]} {
    %c0 = arith.constant 0 : index
    %c0_0 = arith.constant 0 : index
    %0 = vector.load %arg1[%c0, %c0_0] : memref<8x300xf32, #tpu.memory_space<vmem>>, vector<8x300xf32>
    %1 = arith.truncf %0 : vector<8x300xf32> to vector<8x300xbf16>
    %c0_1 = arith.constant 0 : index
    %c0_2 = arith.constant 0 : index
    %2 = vector.load %arg2[%c0_1, %c0_2] : memref<32x300xbf16, #tpu.memory_space<vmem>>, vector<32x300xbf16>
    %cst = arith.constant dense<0.000000e+00> : vector<8x32xf32>
    %3 = tpu.matmul %1, %2, %cst {dimension_numbers = #tpu.dot_dimension_numbers<[1], [1], [0], [0], [0, 0, 1, 0], [], []>} : vector<8x300xbf16>, vector<32x300xbf16>, vector<8x32xf32> -> vector<8x32xf32>
    %c0_3 = arith.constant 0 : index
    %c0_4 = arith.constant 0 : index
    %4 = vector.load %arg3[%c0_3, %c0_4] : memref<1x32xf32, #tpu.memory_space<vmem>>, vector<1x32xf32>
    %5 = vector.broadcast %4 : vector<1x32xf32> to vector<8x32xf32>
    %6 = arith.addf %3, %5 : vector<8x32xf32>
    %cst_5 = arith.constant 0.000000e+00 : f32
    %7 = vector.broadcast %cst_5 : f32 to vector<8x32xf32>
    %8 = arith.maximumf %6, %7 : vector<8x32xf32>
    %c0_6 = arith.constant 0 : index
    %c0_7 = arith.constant 0 : index
    %9 = vector.load %arg4[%c0_6, %c0_7] : memref<4x32xf32, #tpu.memory_space<vmem>>, vector<4x32xf32>
    %cst_8 = arith.constant dense<0.000000e+00> : vector<4x8xf32>
    %10 = tpu.matmul %9, %8, %cst_8 {dimension_numbers = #tpu.dot_dimension_numbers<[1], [1], [0], [0], [0, 0, 1, 0], [], []>} : vector<4x32xf32>, vector<8x32xf32>, vector<4x8xf32> -> vector<4x8xf32>
    %c0_9 = arith.constant 0 : index
    %c0_10 = arith.constant 0 : index
    %11 = vector.load %arg5[%c0_9, %c0_10] : memref<4x1xf32, #tpu.memory_space<vmem>>, vector<4x1xf32>
    %12 = vector.broadcast %11 : vector<4x1xf32> to vector<4x8xf32>
    %13 = arith.addf %10, %12 : vector<4x8xf32>
    %cst_11 = arith.constant dense<0xFF800000> : vector<8xf32>
    %14 = vector.multi_reduction <maximumf>, %13, %cst_11 [0] : vector<4x8xf32> to vector<8xf32>
    %15 = vector.shape_cast %14 : vector<8xf32> to vector<1x8xf32>
    %16 = vector.broadcast %15 : vector<1x8xf32> to vector<4x8xf32>
    %17 = arith.subf %13, %16 : vector<4x8xf32>
    %18 = math.exp %17 : vector<4x8xf32>
    %cst_12 = arith.constant dense<0.000000e+00> : vector<8xf32>
    %19 = vector.multi_reduction <add>, %18, %cst_12 [0] : vector<4x8xf32> to vector<8xf32>
    %20 = vector.shape_cast %19 : vector<8xf32> to vector<1x8xf32>
    %21 = vector.broadcast %20 : vector<1x8xf32> to vector<4x8xf32>
    %22 = arith.divf %18, %21 : vector<4x8xf32>
    %c0_13 = arith.constant 0 : index
    %c0_14 = arith.constant 0 : index
    %23 = vector.load %arg6[%c0_13, %c0_14] : memref<4x8xf32, #tpu.memory_space<vmem>>, vector<4x8xf32>
    tpu.vector_store %arg6[%c0_13, %c0_14], %22 {strides = array<i32>} : memref<4x8xf32, #tpu.memory_space<vmem>>, vector<4x8xf32>,
    return
  }
  func.func @transform_0(%arg0: i32) -> (i32, i32) {
    %c0_i32 = arith.constant 0 : i32
    %c0_i32_0 = arith.constant 0 : i32
    return %arg0, %c0_i32 : i32, i32
  }
  func.func @transform_1(%arg0: i32) -> (i32, i32) {
    %c0_i32 = arith.constant 0 : i32
    %c0_i32_0 = arith.constant 0 : i32
    %c0_i32_1 = arith.constant 0 : i32
    return %c0_i32, %c0_i32_0 : i32, i32
  }
  func.func @transform_2(%arg0: i32) -> (i32, i32) {
    %c0_i32 = arith.constant 0 : i32
    %c0_i32_0 = arith.constant 0 : i32
    %c0_i32_1 = arith.constant 0 : i32
    return %c0_i32, %c0_i32_0 : i32, i32
  }
  func.func @transform_3(%arg0: i32) -> (i32, i32) {
    %c0_i32 = arith.constant 0 : i32
    %c0_i32_0 = arith.constant 0 : i32
    %c0_i32_1 = arith.constant 0 : i32
    return %c0_i32, %c0_i32_0 : i32, i32
  }
  func.func @transform_4(%arg0: i32) -> (i32, i32) {
    %c0_i32 = arith.constant 0 : i32
    %c0_i32_0 = arith.constant 0 : i32
    %c0_i32_1 = arith.constant 0 : i32
    return %c0_i32, %c0_i32_0 : i32, i32
  }
  func.func @transform_5(%arg0: i32) -> (i32, i32) {
    %c0_i32 = arith.constant 0 : i32
    %c0_i32_0 = arith.constant 0 : i32
    return %c0_i32, %arg0 : i32, i32
  }
}

</mosaic_0001>

<llo_original>
// kernel: tpu_custom_call.1
$region0: #{tpu_custom_call.1}
  #allocation0 [shape = 'u32[]', space=smem, size = 0x4, offset = 0x4, fixed_abs, tag = 'smem constant byte address 0x4 - core index']
  #allocation1 [shape = 'u32[144,128]{1,0:T(1,128)}', space=vmem, size = 0x12000, scoped, tag = 'internal scratch']
  %s0 = inlined_call_operand.hbm [shape: f32[8,300], index: 0, kind: input, shape index: {}]
  %s1 = inlined_call_operand.hbm [shape: bf16[32,300], index: 1, kind: input, shape index: {}]
  %s2 = inlined_call_operand.vmem [shape: f32[1,32], index: 2, kind: input, shape index: {}]
  %s3 = inlined_call_operand.vmem [shape: f32[4,32], index: 3, kind: input, shape index: {}]
  %s4 = inlined_call_operand.vmem [shape: f32[4,1], index: 4, kind: input, shape index: {}]
  %s5 = inlined_call_operand.hbm [shape: f32[4,8], index: 5, kind: output, shape index: {}]
  %s6 = sld [smem:[#allocation0]]
  $region38: #{tpu_custom_call.1} parent=0
    _
  %s8 = ssub.s32 1, %s6
  %s9 = scalar_select 0, %s8, %s6
  $region1: #{tpu_custom_call.1} parent=0
    #allocation2 [shape = 'u8[12288]{0}', space=vmem, size = 0x3000, scoped, tag = 'input window, operand 0, single buffered']
    #allocation3 [shape = 's32[1]{0}', space=sflag, size = 0x4, scoped, tag = 'scoped memory for tpu_custom_call.1']
    #allocation4 [shape = 's32[1]{0}', space=sflag, size = 0x4, scoped, tag = 'scoped memory for tpu_custom_call.1']
    #allocation5 [shape = 'u8[24576]{0}', space=vmem, size = 0x6000, scoped, tag = 'input window, operand 1, single buffered']
    #allocation6 [shape = 's32[1]{0}', space=sflag, size = 0x4, scoped, tag = 'scoped memory for tpu_custom_call.1']
    #allocation7 [shape = 'u8[2048]{0}', space=vmem, size = 0x800, scoped, tag = 'output window, operand 0, single buffered']
    %10 = vsyncpa [#allocation3], 0
    %11 = vsyncpa [#allocation6], 0
    %12 = vsyncpa [#allocation4], 0
    // Predicated region
    $region2: #{tpu_custom_call.1} parent=1 // pred_check
      _
    $region3: #{tpu_custom_call.1} parent=1 // pred_check_branch
      %14 = sbr.rel (0) target = $region5
    $region4: #{tpu_custom_call.1} parent=1 // pred_region
      %s16 = ssub.s32 384, 384
      %17 = vsyncadd [#allocation3], %s16
      %s19 = sshll.u32 [#allocation2], 4
      %s20 = int_to_ptr.vmem [resolvable:$true] %s19
      %22 = dma.hbm_to_vmem [thread:$0]  %s0, 384, %s20, [#allocation3]
    $region5: #{tpu_custom_call.1} parent=1 // pred_fallthru
      _
    // Predicated region
    $region6: #{tpu_custom_call.1} parent=1 // pred_check
      _
    $region7: #{tpu_custom_call.1} parent=1 // pred_check_branch
      %24 = sbr.rel (0) target = $region9
    $region8: #{tpu_custom_call.1} parent=1 // pred_region
      %s26 = ssub.s32 768, 768
      %27 = vsyncadd [#allocation6], %s26
      %s28 = sshll.u32 [#allocation5], 4
      %s29 = int_to_ptr.vmem [resolvable:$true] %s28
      %34 = dma.hbm_to_vmem [thread:$0]  %s1, 768, %s29, [#allocation6], 192, 192, 12
    $region9: #{tpu_custom_call.1} parent=1 // pred_fallthru
      _
    // Predicated region
    $region10: #{tpu_custom_call.1} parent=1 // pred_check
      _
    $region11: #{tpu_custom_call.1} parent=1 // pred_check_branch
      %36 = sbr.rel (0) target = $region13
    $region12: #{tpu_custom_call.1} parent=1 // pred_region
      _
    $region13: #{tpu_custom_call.1} parent=1 // pred_fallthru
      _
    // Predicated region
    $region14: #{tpu_custom_call.1} parent=1 // pred_check
      _
    $region15: #{tpu_custom_call.1} parent=1 // pred_check_branch
      %38 = sbr.rel (0) target = $region17
    $region16: #{tpu_custom_call.1} parent=1 // pred_region
      _
    $region17: #{tpu_custom_call.1} parent=1 // pred_fallthru
      _
    // Predicated region
    $region18: #{tpu_custom_call.1} parent=1 // pred_check
      _
    $region19: #{tpu_custom_call.1} parent=1 // pred_check_branch
      %40 = sbr.rel (0) target = $region21
    $region20: #{tpu_custom_call.1} parent=1 // pred_region
      _
    $region21: #{tpu_custom_call.1} parent=1 // pred_fallthru
      _
    // Predicated region
    $region22: #{tpu_custom_call.1} parent=1 // pred_check
      _
    $region23: #{tpu_custom_call.1} parent=1 // pred_check_branch
      %42 = sbr.rel (0) target = $region25
    $region24: #{tpu_custom_call.1} parent=1 // pred_region
      %43 = dma.done [#allocation3], 384
    $region25: #{tpu_custom_call.1} parent=1 // pred_fallthru
      _
    // Predicated region
    $region26: #{tpu_custom_call.1} parent=1 // pred_check
      _
    $region27: #{tpu_custom_call.1} parent=1 // pred_check_branch
      %45 = sbr.rel (0) target = $region29
    $region28: #{tpu_custom_call.1} parent=1 // pred_region
      %46 = dma.done [#allocation6], 768
    $region29: #{tpu_custom_call.1} parent=1 // pred_fallthru
      _
    %v48 = vld [vmem:[#allocation2] sm:$0xff]
    %v49 = vld [vmem:[#allocation2 + $0x8] sm:$0xff]
    %v50 = vld [vmem:[#allocation2 + $0x10] sm:$0xff]
    %v51 = vpack.c.bf16 %v48, %v48
    %v52 = vpack.c.bf16 %v49, %v49
    %v53 = vpack.c.bf16 %v50, %v50
    %v54 = vld [vmem:[#allocation5] sm:$0xff]
    %v55 = vld [vmem:[#allocation5 + $0x8] sm:$0xf]
    %v56 = vld [vmem:[#allocation5 + $0xc] sm:$0xff]
    %v57 = vld [vmem:[#allocation5 + $0x14] sm:$0xf]
    %v58 = vld [vmem:[#allocation5 + $0x18] sm:$0xff]
    %v59 = vld [vmem:[#allocation5 + $0x20] sm:$0xf]
    %v60 = vld [vmem:[#allocation5 + $0x24] sm:$0xff]
    %v61 = vld [vmem:[#allocation5 + $0x2c] sm:$0xf]
    %v62 = vld [vmem:[%s2] sm:$0x1]
    %v64 = vlaneseq
    %v65 = vshrl.u32 %v64, 7
    %v66 = vsub.s32 0, %v65
    %v67 = vrot.slane %v62, %v66
    %v77 = vunpack.c.l.b16 %v54
    %v78 = vunpack.c.h.b16 %v54
    %v79 = vunpack.c.l.b16 %v55
    %v80 = vunpack.c.l.b16 %v56
    %v81 = vunpack.c.h.b16 %v56
    %v82 = vunpack.c.l.b16 %v57
    %v83 = vunpack.c.l.b16 %v58
    %v84 = vunpack.c.h.b16 %v58
    %v85 = vunpack.c.l.b16 %v59
    %v86 = vunpack.c.l.b16 %v60
    %v87 = vunpack.c.h.b16 %v60
    %v88 = vunpack.c.l.b16 %v61
    %v89 = vpack.c.b16 %v80, %v77
    %v90 = vpack.c.b16 %v81, %v78
    %v91 = vpack.c.b16 %v82, %v79
    %v92 = vpack.c.b16 %v86, %v83
    %v93 = vpack.c.b16 %v87, %v84
    %v94 = vpack.c.b16 %v88, %v85
    %vm99 = vcmask 359424
    %v101 = vsel %vm99, %v53, 0
    %v104 = vsel %vm99, %v91, 0
    %v107 = vsel %vm99, %v94, 0
    %109 = vmatprep.subr.bf16.mxu0 %v90
    %110 = vmatpush1.bf16.xpose.msra.mxu0 %v89
    %111 = vmatprep.subr.bf16.mxu0 %v93
    %112 = vmatpush1.bf16.xpose.msra.mxu0 %v92
    %113 = vmatprep.subr.bf16.mxu0 0
    %114 = vmatpush1.bf16.xpose.msra.mxu0 0
    %115 = vmatprep.subr.bf16.mxu0 0
    %116 = vmatpush1.bf16.xpose.msra.mxu0 0
    %117 = vmatprep.subr.bf16.mxu0 0
    %118 = vmatpush1.bf16.xpose.msra.mxu0 0
    %119 = vmatprep.subr.bf16.mxu0 0
    %120 = vmatpush1.bf16.xpose.msra.mxu0 0
    %121 = vmatprep.subr.bf16.mxu0 0
    %122 = vmatpush1.bf16.xpose.msra.mxu0 0
    %123 = vmatprep.subr.bf16.mxu0 0
    %124 = vmatpush1.bf16.xpose.msra.mxu0 0
    %125 = vmatprep.subr.bf16.mxu0 0
    %126 = vmatpush1.bf16.xpose.msra.mxu0 0
    %127 = vmatprep.subr.bf16.mxu0 0
    %128 = vmatpush1.bf16.xpose.msra.mxu0 0
    %129 = vmatprep.subr.bf16.mxu0 0
    %130 = vmatpush1.bf16.xpose.msra.mxu0 0
    %131 = vmatprep.subr.bf16.mxu0 0
    %132 = vmatpush1.bf16.xpose.msra.mxu0 0
    %133 = vmatprep.subr.bf16.mxu0 0
    %134 = vmatpush1.bf16.xpose.msra.mxu0 0
    %135 = vmatprep.subr.bf16.mxu0 0
    %136 = vmatpush1.bf16.xpose.msra.mxu0 0
    %137 = vmatprep.subr.bf16.mxu0 0
    %138 = vmatpush1.bf16.xpose.msra.mxu0 0
    %139 = vmatprep.subr.bf16.mxu0 0
    %140 = vmatpush1.bf16.xpose.msra.mxu0 0
    %141 = vmatprep.mubr.bf16.mxu0 %v52
    %142 = vmatmul.mubr.bf16.gmra.mrb[0].mxu0 %v51
    %v143 = vpop.f32.mrb[0].mxu0
    %v144 = vadd.f32 %v67, %v143
    %v145 = vpop.f32.mrb[0].mxu0
    %v146 = vpop.f32.mrb[0].mxu0
    %v147 = vpop.f32.mrb[0].mxu0
    %148 = vdwg.mxu0
    %149 = vmatprep.subr.bf16.mxu0 0
    %150 = vmatpush1.bf16.xpose.msra.mxu0 %v104
    %151 = vmatprep.subr.bf16.mxu0 0
    %152 = vmatpush1.bf16.xpose.msra.mxu0 %v107
    %153 = vmatprep.subr.bf16.mxu0 0
    %154 = vmatpush1.bf16.xpose.msra.mxu0 0
    %155 = vmatprep.subr.bf16.mxu0 0
    %156 = vmatpush1.bf16.xpose.msra.mxu0 0
    %157 = vmatprep.subr.bf16.mxu0 0
    %158 = vmatpush1.bf16.xpose.msra.mxu0 0
    %159 = vmatprep.subr.bf16.mxu0 0
    %160 = vmatpush1.bf16.xpose.msra.mxu0 0
    %161 = vmatprep.subr.bf16.mxu0 0
    %162 = vmatpush1.bf16.xpose.msra.mxu0 0
    %163 = vmatprep.subr.bf16.mxu0 0
    %164 = vmatpush1.bf16.xpose.msra.mxu0 0
    %165 = vmatprep.subr.bf16.mxu0 0
    %166 = vmatpush1.bf16.xpose.msra.mxu0 0
    %167 = vmatprep.subr.bf16.mxu0 0
    %168 = vmatpush1.bf16.xpose.msra.mxu0 0
    %169 = vmatprep.subr.bf16.mxu0 0
    %170 = vmatpush1.bf16.xpose.msra.mxu0 0
    %171 = vmatprep.subr.bf16.mxu0 0
    %172 = vmatpush1.bf16.xpose.msra.mxu0 0
    %173 = vmatprep.subr.bf16.mxu0 0
    %174 = vmatpush1.bf16.xpose.msra.mxu0 0
    %175 = vmatprep.subr.bf16.mxu0 0
    %176 = vmatpush1.bf16.xpose.msra.mxu0 0
    %177 = vmatprep.subr.bf16.mxu0 0
    %178 = vmatpush1.bf16.xpose.msra.mxu0 0
    %179 = vmatprep.subr.bf16.mxu0 0
    %180 = vmatpush1.bf16.xpose.msra.mxu0 0
    %181 = vmatprep.mubr.bf16.mxu0 0
    %182 = vmatmul.mubr.bf16.gmra.mrb[0].mxu0 %v101
    %v183 = vpop.f32.mrb[0].mxu0
    %v184 = vadd.f32 %v144, %v183
    %v185 = vpop.f32.mrb[0].mxu0
    %v186 = vpop.f32.mrb[0].mxu0
    %v187 = vpop.f32.mrb[0].mxu0
    %188 = vdwg.mxu0
    %v189 = vmax.f32 %v184, 0.0
    %v190 = vld [vmem:[%s3] sm:$0xf]
    %v191 = vld [vmem:[%s4] sm:$0xf]
    %193 = vset.pattern.permute.xlu0 0
    %194 = vperm.xlu0 %193, %v191
    %v195 = vpop.permute.xlu0 %194
    %vm197 = vcmask 261120
    %v199 = vsel %vm197, %v190, 0
    %v202 = vsel %vm197, %v189, 0
    %204 = vmatprep.subr.mxu0 0.0
    %205 = vmatpush1.xpose.msra.mxu0 %v202
    %206 = vmatprep.subr.mxu0 0.0
    %207 = vmatpush1.xpose.msra.mxu0 0.0
    %208 = vmatprep.subr.mxu0 0.0
    %209 = vmatpush1.xpose.msra.mxu0 0.0
    %210 = vmatprep.subr.mxu0 0.0
    %211 = vmatpush1.xpose.msra.mxu0 0.0
    %212 = vmatprep.subr.mxu0 0.0
    %213 = vmatpush1.xpose.msra.mxu0 0.0
    %214 = vmatprep.subr.mxu0 0.0
    %215 = vmatpush1.xpose.msra.mxu0 0.0
    %216 = vmatprep.subr.mxu0 0.0
    %217 = vmatpush1.xpose.msra.mxu0 0.0
    %218 = vmatprep.subr.mxu0 0.0
    %219 = vmatpush1.xpose.msra.mxu0 0.0
    %220 = vmatprep.subr.mxu0 0.0
    %221 = vmatpush1.xpose.msra.mxu0 0.0
    %222 = vmatprep.subr.mxu0 0.0
    %223 = vmatpush1.xpose.msra.mxu0 0.0
    %224 = vmatprep.subr.mxu0 0.0
    %225 = vmatpush1.xpose.msra.mxu0 0.0
    %226 = vmatprep.subr.mxu0 0.0
    %227 = vmatpush1.xpose.msra.mxu0 0.0
    %228 = vmatprep.subr.mxu0 0.0
    %229 = vmatpush1.xpose.msra.mxu0 0.0
    %230 = vmatprep.subr.mxu0 0.0
    %231 = vmatpush1.xpose.msra.mxu0 0.0
    %232 = vmatprep.subr.mxu0 0.0
    %233 = vmatpush1.xpose.msra.mxu0 0.0
    %234 = vmatprep.subr.mxu0 0.0
    %235 = vmatpush1.xpose.msra.mxu0 0.0
    %236 = vmatprep.subr.mxu0 0.0
    %237 = vmatpush1.xpose.msra.mxu0 0.0
    %238 = vmatprep.subr.mxu0 0.0
    %239 = vmatpush1.xpose.msra.mxu0 0.0
    %240 = vmatprep.subr.mxu0 0.0
    %241 = vmatpush1.xpose.msra.mxu0 0.0
    %242 = vmatprep.subr.mxu0 0.0
    %243 = vmatpush1.xpose.msra.mxu0 0.0
    %244 = vmatprep.subr.mxu0 0.0
    %245 = vmatpush1.xpose.msra.mxu0 0.0
    %246 = vmatprep.subr.mxu0 0.0
    %247 = vmatpush1.xpose.msra.mxu0 0.0
    %248 = vmatprep.subr.mxu0 0.0
    %249 = vmatpush1.xpose.msra.mxu0 0.0
    %250 = vmatprep.subr.mxu0 0.0
    %251 = vmatpush1.xpose.msra.mxu0 0.0
    %252 = vmatprep.subr.mxu0 0.0
    %253 = vmatpush1.xpose.msra.mxu0 0.0
    %254 = vmatprep.subr.mxu0 0.0
    %255 = vmatpush1.xpose.msra.mxu0 0.0
    %256 = vmatprep.subr.mxu0 0.0
    %257 = vmatpush1.xpose.msra.mxu0 0.0
    %258 = vmatprep.subr.mxu0 0.0
    %259 = vmatpush1.xpose.msra.mxu0 0.0
    %260 = vmatprep.subr.mxu0 0.0
    %261 = vmatpush1.xpose.msra.mxu0 0.0
    %262 = vmatprep.subr.mxu0 0.0
    %263 = vmatpush1.xpose.msra.mxu0 0.0
    %264 = vmatprep.subr.mxu0 0.0
    %265 = vmatpush1.xpose.msra.mxu0 0.0
    %266 = vmatprep.subr.mxu0 0.0
    %267 = vmatpush1.xpose.msra.mxu0 0.0
    %268 = vmatprep.mubr.f32.mxu0 0.0
    %269 = vmatmul.mubr.f32.gmra.mrb[0].mxu0 %v199
    %v270 = vpop.f32.mrb[0].mxu0
    %v271 = vadd.f32 %v195, %v270
    %v272 = vpop.f32.mrb[0].mxu0
    %273 = vdwg.mxu0
    %vm274 = vcmask 60416
    %v275 = vsel %vm274, %v271, -inf
    %v276 = vrot.slane %v275, 4
    %v277 = vmax.f32 %v275, %v276
    %v278 = vrot.slane %v277, 2
    %v279 = vmax.f32 %v277, %v278
    %v280 = vrot.slane %v279, 1
    %v281 = vmax.f32 %v279, %v280
    %v282 = vsub.f32 %v271, %v281
    %v283 = vmul.f32 %v282, 1.442695
    %v284 = vpow.pop %v283
    %v285 = vsel %vm274, %v284, 0.0
    %v286 = vrot.slane %v285, 4
    %v287 = vadd.f32 %v285, %v286
    %v288 = vrot.slane %v287, 2
    %v289 = vadd.f32 %v287, %v288
    %v290 = vrot.slane %v289, 1
    %v291 = vadd.f32 %v289, %v290
    %v292 = vrcp.pop %v291
    %v293 = vmul.f32 %v284, %v292
    %294 = vst.msk [vmem:[#allocation7] sm:$0xf] %vm274, %v293
    // Predicated region
    $region30: #{tpu_custom_call.1} parent=1 // pred_check
      _
    $region31: #{tpu_custom_call.1} parent=1 // pred_check_branch
      %296 = sbr.rel (0) target = $region33
    $region32: #{tpu_custom_call.1} parent=1 // pred_region
      %s298 = ssub.s32 64, 64
      %299 = vsyncadd [#allocation4], %s298
      %s301 = sshll.u32 [#allocation7], 4
      %s302 = int_to_ptr.vmem [resolvable:$true] %s301
      %304 = dma.vmem_to_hbm [thread:$0]  %s302, 64, %s5, [#allocation4]
    $region33: #{tpu_custom_call.1} parent=1 // pred_fallthru
      _
    // Predicated region
    $region34: #{tpu_custom_call.1} parent=1 // pred_check
      _
    $region35: #{tpu_custom_call.1} parent=1 // pred_check_branch
      %306 = sbr.rel (0) target = $region37
    $region36: #{tpu_custom_call.1} parent=1 // pred_region
      %307 = dma.done [#allocation4], 64
    $region37: #{tpu_custom_call.1} parent=1 // pred_fallthru
      _
    %308 = vsyncpa [#allocation3], 1
    %309 = vsyncpa [#allocation6], 1
    %310 = vsyncpa [#allocation4], 1

</llo_original>
